<compile_context>
chip_gen: v7x
topology: tpu7x:2x2x1
jax: 0.10.0
libtpu: 0.0.40
codegen_flags: <defaults>
</compile_context>

<pallas_src>
import jax
import jax.numpy as jnp
from jax.experimental import pallas as pl
from jax.experimental.pallas import tpu as pltpu


LANE_TILE = 1024   # lanes per tile, multiple of 128 (lane-dense, unmasked stores)
ROW_TILE = 256     # sublane rows per tile, multiple of 8  (~1 MiB f32 tile)


def _specific_norm_kernel(x_ref, o_ref):
    # (x - mean) / std with mean = std = 0.5 folded in: fused VPU sub + mul,
    # multiply-by-2.0 is exactly divide-by-0.5.
    o_ref[...] = (x_ref[...] - 0.5) * 2.0


def specific_norm(x):
    """Equivalent of SpecificNorm.forward: (x - 0.5) / 0.5 elementwise (NCHW input)."""
    N, C, H, W = x.shape
    assert C == 3, "SpecificNorm expects 3 channels"

    total = N * C * H * W

    # Flatten to a lane-dense 2D slab (rows, LANE_TILE); pad the tail if needed.
    lane = LANE_TILE
    rows = -(-total // lane)                       # ceil-div
    tr = ROW_TILE if rows > ROW_TILE else rows     # row tile: multiple of 8, or full dim
    padded_rows = -(-rows // tr) * tr
    padded_total = padded_rows * lane

    flat = x.reshape(total)
    if padded_total != total:
        flat = jnp.pad(flat, (0, padded_total - total))
    x2 = flat.reshape(padded_rows, lane)

    grid = (padded_rows // tr,)

    out = pl.pallas_call(
        _specific_norm_kernel,
        out_shape=jax.ShapeDtypeStruct((padded_rows, lane), x.dtype),
        grid=grid,
        in_specs=[pl.BlockSpec((tr, lane), lambda i: (i, 0))],
        out_specs=pl.BlockSpec((tr, lane), lambda i: (i, 0)),
        compiler_params=pltpu.CompilerParams(
            dimension_semantics=("parallel",),
        ),
    )(x2)

    out = out.reshape(padded_total)[:total].reshape(N, C, H, W)
    return out


if __name__ == "__main__":
    key = jax.random.PRNGKey(0)
    x = jax.random.uniform(key, (2, 3, 16, 16), dtype=jnp.float32)

    y = specific_norm(x)
    y = jax.block_until_ready(y)

    # Reference check in plain JAX (same semantics as the PyTorch forward).
    ref = (x - 0.5) / 0.5
    assert y.shape == x.shape
    assert jnp.allclose(y, ref, atol=1e-6), "mismatch vs reference"

    print("KERNEL_OK")
</pallas_src>

<mosaic_0001>
module attributes {stable_mosaic.version = 11 : i64} {
  func.func @_specific_norm_kernel(%arg0: i32, %arg1: memref<2x1024xf32, #tpu.memory_space<vmem>>, %arg2: memref<2x1024xf32, #tpu.memory_space<vmem>>) attributes {dimension_semantics = [#tpu.dimension_semantics<parallel>], iteration_bounds = array<i64: 1>, scalar_prefetch = 0 : i64, scratch_operands = 0 : i64, tpu.core_type = #tpu.core_type<tc>, window_params = [{transform_indices = @transform_0, window_bounds = array<i64: 2, 1024>}, {transform_indices = @transform_1, window_bounds = array<i64: 2, 1024>}]} {
    %c0 = arith.constant 0 : index
    %c0_0 = arith.constant 0 : index
    %0 = vector.load %arg1[%c0, %c0_0] : memref<2x1024xf32, #tpu.memory_space<vmem>>, vector<2x1024xf32>
    %cst = arith.constant 5.000000e-01 : f32
    %1 = vector.broadcast %cst : f32 to vector<2x1024xf32>
    %2 = arith.subf %0, %1 : vector<2x1024xf32>
    %cst_1 = arith.constant 2.000000e+00 : f32
    %3 = vector.broadcast %cst_1 : f32 to vector<2x1024xf32>
    %4 = arith.mulf %2, %3 : vector<2x1024xf32>
    %c0_2 = arith.constant 0 : index
    %c0_3 = arith.constant 0 : index
    %5 = vector.load %arg2[%c0_2, %c0_3] : memref<2x1024xf32, #tpu.memory_space<vmem>>, vector<2x1024xf32>
    tpu.vector_store %arg2[%c0_2, %c0_3], %4 {strides = array<i32>} : memref<2x1024xf32, #tpu.memory_space<vmem>>, vector<2x1024xf32>,
    return
  }
  func.func @transform_0(%arg0: i32) -> (i32, i32) {
    %c0_i32 = arith.constant 0 : i32
    %c0_i32_0 = arith.constant 0 : i32
    return %arg0, %c0_i32 : i32, i32
  }
  func.func @transform_1(%arg0: i32) -> (i32, i32) {
    %c0_i32 = arith.constant 0 : i32
    %c0_i32_0 = arith.constant 0 : i32
    return %arg0, %c0_i32 : i32, i32
  }
}

</mosaic_0001>

<llo_original>
// kernel: tpu_custom_call.1
$region0: #{tpu_custom_call.1}
  #allocation0 [shape = 'u32[]', space=smem, size = 0x4, offset = 0x4, fixed_abs, tag = 'smem constant byte address 0x4 - core index']
  #allocation1 [shape = 'u32[144,128]{1,0:T(1,128)}', space=vmem, size = 0x12000, scoped, tag = 'internal scratch']
  %s0 = inlined_call_operand.hbm [shape: f32[2,1024], index: 0, kind: input, shape index: {}]
  %s1 = inlined_call_operand.hbm [shape: f32[2,1024], index: 1, kind: output, shape index: {}]
  %s2 = sld [smem:[#allocation0]]
  $region18: #{tpu_custom_call.1} parent=0
    _
  %s4 = ssub.s32 1, %s2
  %s5 = scalar_select 0, %s4, %s2
  $region1: #{tpu_custom_call.1} parent=0
    #allocation2 [shape = 'u8[8192]{0}', space=vmem, size = 0x2000, scoped, tag = 'input window, operand 0, single buffered']
    #allocation3 [shape = 's32[1]{0}', space=sflag, size = 0x4, scoped, tag = 'scoped memory for tpu_custom_call.1']
    #allocation4 [shape = 's32[1]{0}', space=sflag, size = 0x4, scoped, tag = 'scoped memory for tpu_custom_call.1']
    #allocation5 [shape = 'u8[8192]{0}', space=vmem, size = 0x2000, scoped, tag = 'output window, operand 0, single buffered']
    %6 = vsyncpa [#allocation3], 0
    %7 = vsyncpa [#allocation4], 0
    // Predicated region
    $region2: #{tpu_custom_call.1} parent=1 // pred_check
      _
    $region3: #{tpu_custom_call.1} parent=1 // pred_check_branch
      %9 = sbr.rel (0) target = $region5
    $region4: #{tpu_custom_call.1} parent=1 // pred_region
      %s11 = ssub.s32 256, 256
      %12 = vsyncadd [#allocation3], %s11
      %s14 = sshll.u32 [#allocation2], 4
      %s15 = int_to_ptr.vmem [resolvable:$true] %s14
      %17 = dma.hbm_to_vmem [thread:$0]  %s0, 256, %s15, [#allocation3]
    $region5: #{tpu_custom_call.1} parent=1 // pred_fallthru
      _
    // Predicated region
    $region6: #{tpu_custom_call.1} parent=1 // pred_check
      _
    $region7: #{tpu_custom_call.1} parent=1 // pred_check_branch
      %19 = sbr.rel (0) target = $region9
    $region8: #{tpu_custom_call.1} parent=1 // pred_region
      %20 = dma.done [#allocation3], 256
    $region9: #{tpu_custom_call.1} parent=1 // pred_fallthru
      _
    %v21 = vld [vmem:[#allocation2] sm:$0xff]
    %v22 = vld [vmem:[#allocation2 + $0x8] sm:$0xff]
    %v23 = vsub.f32 %v21, 0.5
    %v24 = vsub.f32 %v22, 0.5
    %v25 = vmul.f32 %v23, 2.0
    %v26 = vmul.f32 %v24, 2.0
    %27 = vst [vmem:[#allocation5] sm:$0xff] %v25
    %28 = vst [vmem:[#allocation5 + $0x8] sm:$0xff] %v26
    // Predicated region
    $region10: #{tpu_custom_call.1} parent=1 // pred_check
      _
    $region11: #{tpu_custom_call.1} parent=1 // pred_check_branch
      %30 = sbr.rel (0) target = $region13
    $region12: #{tpu_custom_call.1} parent=1 // pred_region
      %s32 = ssub.s32 256, 256
      %33 = vsyncadd [#allocation4], %s32
      %s35 = sshll.u32 [#allocation5], 4
      %s36 = int_to_ptr.vmem [resolvable:$true] %s35
      %38 = dma.vmem_to_hbm [thread:$0]  %s36, 256, %s1, [#allocation4]
    $region13: #{tpu_custom_call.1} parent=1 // pred_fallthru
      _
    // Predicated region
    $region14: #{tpu_custom_call.1} parent=1 // pred_check
      _
    $region15: #{tpu_custom_call.1} parent=1 // pred_check_branch
      %40 = sbr.rel (0) target = $region17
    $region16: #{tpu_custom_call.1} parent=1 // pred_region
      %41 = dma.done [#allocation4], 256
    $region17: #{tpu_custom_call.1} parent=1 // pred_fallthru
      _
    %42 = vsyncpa [#allocation3], 1
    %43 = vsyncpa [#allocation4], 1

</llo_original>
